<compile_context>
chip_gen: v5e
topology: v5e:2x2
jax: 0.10.0
libtpu: 0.0.40
codegen_flags: <defaults>
</compile_context>

<pallas_src>
import jax
import jax.numpy as jnp
from jax.experimental import pallas as pl
from jax.experimental.pallas import tpu as pltpu


def linear_kernel(x_ref, w_ref, b_ref, o_ref):
    # MXU matmul with f32 accumulation + broadcast bias add on the VPU.
    acc = jnp.dot(x_ref[...], w_ref[...], preferred_element_type=jnp.float32)
    o_ref[...] = (acc + b_ref[...]).astype(o_ref.dtype)


def _round_up(n, m):
    return ((n + m - 1) // m) * m


def encoder_forward(x, w, b, *, tm=4096):
    """Pallas implementation of encoder.forward.

    x: (B, num_g) float32
    w: (num_g, 200) float32   (PyTorch nn.Linear weight, transposed)
    b: (200,) or (1, 200) float32
    returns (B, 200) float32
    """
    B, num_g = x.shape
    out_f = w.shape[1]
    b2 = jnp.reshape(b, (1, out_f))

    vmem_params = pltpu.CompilerParams(vmem_limit_bytes=32 * 1024 * 1024)

    # ---- Fast path: tiny batch -> single un-tiled step, no padding/slicing anywhere.
    if B <= 64:
        return pl.pallas_call(
            linear_kernel,
            out_shape=jax.ShapeDtypeStruct((B, out_f), x.dtype),
            grid_spec=pltpu.PrefetchScalarGridSpec(
                num_scalar_prefetch=0,
                grid=(1,),
                in_specs=[
                    pl.BlockSpec((B, num_g), lambda i: (0, 0)),
                    pl.BlockSpec((num_g, out_f), lambda i: (0, 0)),
                    pl.BlockSpec((1, out_f), lambda i: (0, 0)),
                ],
                out_specs=pl.BlockSpec((B, out_f), lambda i: (0, 0)),
            ),
            compiler_params=vmem_params,
        )(x, w, b2)

    # ---- Main path: tile the batch dim; no wrapper padding (Pallas masks the ragged
    #      last block). Tiles are multiples of 8 (sublane).
    b_rounded = _round_up(B, 8)
    half = _round_up(-(-b_rounded // 2), 8)      # ceil(B/2) -> forces >= 2 grid steps (v7x megacore)
    quarter = _round_up(-(-b_rounded // 4), 8)   # prefer >= 4 steps once B is large enough
    tm_eff = min(tm, max(512, quarter), half)

    grid = (pl.cdiv(B, tm_eff),)

    return pl.pallas_call(
        linear_kernel,
        out_shape=jax.ShapeDtypeStruct((B, out_f), x.dtype),
        grid_spec=pltpu.PrefetchScalarGridSpec(
            num_scalar_prefetch=0,
            grid=grid,
            in_specs=[
                # X: one (tm_eff, num_g) row-tile per grid step.
                pl.BlockSpec((tm_eff, num_g), lambda i: (i, 0)),
                # W, b: single resident block across all steps.
                pl.BlockSpec((num_g, out_f), lambda i: (0, 0)),
                pl.BlockSpec((1, out_f), lambda i: (0, 0)),
            ],
            # Output written at its natural (B, 200) width — no pad, no post-call slice.
            out_specs=pl.BlockSpec((tm_eff, out_f), lambda i: (i, 0)),
        ),
        compiler_params=pltpu.CompilerParams(
            # Batch rows are independent -> shard across TensorCores (v7x megacore).
            dimension_semantics=("parallel",),
            vmem_limit_bytes=32 * 1024 * 1024,
        ),
    )(x, w, b2)


if __name__ == "__main__":
    # Small shapes consistent with the module: encoder(num_g=32, hid=16)
    num_g = 32
    hid = 16  # unused by forward (matches the PyTorch module)
    out_features = 200

    key = jax.random.PRNGKey(0)
    kx, kw, kb, kx2 = jax.random.split(key, 4)

    # Deterministic parameter init (mimic nn.Linear's U(-1/sqrt(fan_in), 1/sqrt(fan_in)))
    bound = 1.0 / jnp.sqrt(jnp.float32(num_g))
    w_torch = jax.random.uniform(kw, (out_features, num_g), jnp.float32, -bound, bound)
    b = jax.random.uniform(kb, (out_features,), jnp.float32, -bound, bound)
    w = w_torch.T  # (num_g, 200) for X @ W

    # 1) Tiny batch (fast path), B=8
    x_small = jax.random.normal(kx, (8, num_g), jnp.float32)
    out_small = jax.block_until_ready(encoder_forward(x_small, w, b))
    ref_small = x_small @ w + b.reshape(1, out_features)
    assert out_small.shape == (8, out_features)
    assert jnp.allclose(out_small, ref_small, atol=1e-5, rtol=1e-5)

    # 2) Gridded path with a ragged last block, B=200
    x_med = jax.random.normal(kx2, (200, num_g), jnp.float32)
    out_med = jax.block_until_ready(encoder_forward(x_med, w, b))
    ref_med = x_med @ w + b.reshape(1, out_features)
    assert out_med.shape == (200, out_features)
    assert jnp.allclose(out_med, ref_med, atol=1e-5, rtol=1e-5)

    print("KERNEL_OK")
</pallas_src>

<mosaic_0001>
module attributes {stable_mosaic.version = 11 : i64} {
  func.func @linear_kernel(%arg0: i32, %arg1: memref<8x32xf32, #tpu.memory_space<vmem>>, %arg2: memref<32x200xf32, #tpu.memory_space<vmem>>, %arg3: memref<1x200xf32, #tpu.memory_space<vmem>>, %arg4: memref<8x200xf32, #tpu.memory_space<vmem>>) attributes {dimension_semantics = [#tpu.dimension_semantics<arbitrary>], iteration_bounds = array<i64: 1>, scalar_prefetch = 0 : i64, scratch_operands = 0 : i64, tpu.core_type = #tpu.core_type<tc>, window_params = [{pipeline_mode = #tpu.pipeline_mode<synchronous>, transform_indices = @transform_0, window_bounds = array<i64: 8, 32>}, {pipeline_mode = #tpu.pipeline_mode<synchronous>, transform_indices = @transform_1, window_bounds = array<i64: 32, 200>}, {pipeline_mode = #tpu.pipeline_mode<synchronous>, transform_indices = @transform_2, window_bounds = array<i64: 1, 200>}, {pipeline_mode = #tpu.pipeline_mode<synchronous>, transform_indices = @transform_3, window_bounds = array<i64: 8, 200>}]} {
    %c0 = arith.constant 0 : index
    %c0_0 = arith.constant 0 : index
    %0 = vector.load %arg1[%c0, %c0_0] : memref<8x32xf32, #tpu.memory_space<vmem>>, vector<8x32xf32>
    %c0_1 = arith.constant 0 : index
    %c0_2 = arith.constant 0 : index
    %1 = vector.load %arg2[%c0_1, %c0_2] : memref<32x200xf32, #tpu.memory_space<vmem>>, vector<32x200xf32>
    %cst = arith.constant dense<0.000000e+00> : vector<8x200xf32>
    %2 = tpu.matmul %0, %1, %cst {dimension_numbers = #tpu.dot_dimension_numbers<[1], [0], [0], [1], [0, 0, 1, 1], [], []>} : vector<8x32xf32>, vector<32x200xf32>, vector<8x200xf32> -> vector<8x200xf32>
    %c0_3 = arith.constant 0 : index
    %c0_4 = arith.constant 0 : index
    %3 = vector.load %arg3[%c0_3, %c0_4] : memref<1x200xf32, #tpu.memory_space<vmem>>, vector<1x200xf32>
    %4 = vector.broadcast %3 : vector<1x200xf32> to vector<8x200xf32>
    %5 = arith.addf %2, %4 : vector<8x200xf32>
    %c0_5 = arith.constant 0 : index
    %c0_6 = arith.constant 0 : index
    %6 = vector.load %arg4[%c0_5, %c0_6] : memref<8x200xf32, #tpu.memory_space<vmem>>, vector<8x200xf32>
    tpu.vector_store %arg4[%c0_5, %c0_6], %5 {strides = array<i32>} : memref<8x200xf32, #tpu.memory_space<vmem>>, vector<8x200xf32>,
    return
  }
  func.func @transform_0(%arg0: i32) -> (i32, i32) {
    %c0_i32 = arith.constant 0 : i32
    %c0_i32_0 = arith.constant 0 : i32
    %c0_i32_1 = arith.constant 0 : i32
    return %c0_i32, %c0_i32_0 : i32, i32
  }
  func.func @transform_1(%arg0: i32) -> (i32, i32) {
    %c0_i32 = arith.constant 0 : i32
    %c0_i32_0 = arith.constant 0 : i32
    %c0_i32_1 = arith.constant 0 : i32
    return %c0_i32, %c0_i32_0 : i32, i32
  }
  func.func @transform_2(%arg0: i32) -> (i32, i32) {
    %c0_i32 = arith.constant 0 : i32
    %c0_i32_0 = arith.constant 0 : i32
    %c0_i32_1 = arith.constant 0 : i32
    return %c0_i32, %c0_i32_0 : i32, i32
  }
  func.func @transform_3(%arg0: i32) -> (i32, i32) {
    %c0_i32 = arith.constant 0 : i32
    %c0_i32_0 = arith.constant 0 : i32
    %c0_i32_1 = arith.constant 0 : i32
    return %c0_i32, %c0_i32_0 : i32, i32
  }
}

</mosaic_0001>

<llo_original>
// kernel: tpu_custom_call.1
$region0: #{tpu_custom_call.1}
  #allocation0 [shape = 'u32[]', space=smem, size = 0x4, offset = 0x4, fixed_abs, tag = 'smem constant byte address 0x4 - core index']
  #allocation1 [shape = 'u32[72,128]{1,0:T(1,128)}', space=vmem, size = 0x9000, scoped, tag = 'internal scratch']
  %s0 = inlined_call_operand.hbm [shape: f32[8,32], index: 0, kind: input, shape index: {}]
  %s1 = inlined_call_operand.hbm [shape: f32[32,200], index: 1, kind: input, shape index: {}]
  %s2 = inlined_call_operand.hbm [shape: f32[1,200], index: 2, kind: input, shape index: {}]
  %s3 = inlined_call_operand.hbm [shape: f32[8,200], index: 3, kind: output, shape index: {}]
  %s4 = sld [smem:[#allocation0]]
  $region34: #{tpu_custom_call.1} parent=0
    _
  %s6 = ssub.s32 1, %s4
  %s7 = scalar_select 0, %s6, %s4
  $region1: #{tpu_custom_call.1} parent=0
    #allocation2 [shape = 'u8[4096]{0}', space=vmem, size = 0x1000, scoped, tag = 'input window, operand 0, single buffered']
    #allocation3 [shape = 's32[1]{0}', space=sflag, size = 0x4, scoped, tag = 'scoped memory for tpu_custom_call.1']
    #allocation4 [shape = 's32[1]{0}', space=sflag, size = 0x4, scoped, tag = 'scoped memory for tpu_custom_call.1']
    #allocation5 [shape = 'u8[32768]{0}', space=vmem, size = 0x8000, scoped, tag = 'input window, operand 1, single buffered']
    #allocation6 [shape = 's32[1]{0}', space=sflag, size = 0x4, scoped, tag = 'scoped memory for tpu_custom_call.1']
    #allocation7 [shape = 'u8[1024]{0}', space=vmem, size = 0x400, scoped, tag = 'input window, operand 2, single buffered']
    #allocation8 [shape = 'u8[8192]{0}', space=vmem, size = 0x2000, scoped, tag = 'output window, operand 0, single buffered']
    %8 = vsyncpa [#allocation3], 0
    %9 = vsyncpa [#allocation6], 0
    %10 = vsyncpa [#allocation4], 0
    // Predicated region
    $region2: #{tpu_custom_call.1} parent=1 // pred_check
      _
    $region3: #{tpu_custom_call.1} parent=1 // pred_check_branch
      %12 = sbr.rel (0) target = $region5
    $region4: #{tpu_custom_call.1} parent=1 // pred_region
      %14 = vsyncadd [#allocation3], 0
      %s16 = sshll.u32 %s0, 4
      %s17 = int_to_ptr.hbm [resolvable:$true] %s16
      %s18 = sshll.u32 [#allocation2], 4
      %s19 = int_to_ptr.vmem [resolvable:$true] %s18
      %21 = dma.hbm_to_vmem [thread:$0]  %s17, 128, %s19, [#allocation3]
    $region5: #{tpu_custom_call.1} parent=1 // pred_fallthru
      _
    // Predicated region
    $region6: #{tpu_custom_call.1} parent=1 // pred_check
      _
    $region7: #{tpu_custom_call.1} parent=1 // pred_check_branch
      %23 = sbr.rel (0) target = $region9
    $region8: #{tpu_custom_call.1} parent=1 // pred_region
      %25 = vsyncadd [#allocation6], 0
      %s26 = sshll.u32 %s1, 4
      %s27 = int_to_ptr.hbm [resolvable:$true] %s26
      %s28 = sshll.u32 [#allocation5], 4
      %s29 = int_to_ptr.vmem [resolvable:$true] %s28
      %34 = dma.hbm_to_vmem [thread:$0]  %s27, 1024, %s29, [#allocation6], 256, 256, 16
    $region9: #{tpu_custom_call.1} parent=1 // pred_fallthru
      _
    // Predicated region
    $region10: #{tpu_custom_call.1} parent=1 // pred_check
      _
    $region11: #{tpu_custom_call.1} parent=1 // pred_check_branch
      %36 = sbr.rel (0) target = $region13
    $region12: #{tpu_custom_call.1} parent=1 // pred_region
      %38 = vsyncadd [#allocation6], 0
      %s40 = sshll.u32 %s2, 4
      %s41 = int_to_ptr.hbm [resolvable:$true] %s40
      %s42 = sshll.u32 [#allocation7], 4
      %s43 = int_to_ptr.vmem [resolvable:$true] %s42
      %45 = dma.hbm_to_vmem [thread:$0]  %s41, 32, %s43, [#allocation6]
    $region13: #{tpu_custom_call.1} parent=1 // pred_fallthru
      _
    // Predicated region
    $region14: #{tpu_custom_call.1} parent=1 // pred_check
      _
    $region15: #{tpu_custom_call.1} parent=1 // pred_check_branch
      %47 = sbr.rel (0) target = $region17
    $region16: #{tpu_custom_call.1} parent=1 // pred_region
      %49 = dma.done [#allocation3], 128
    $region17: #{tpu_custom_call.1} parent=1 // pred_fallthru
      _
    // Predicated region
    $region18: #{tpu_custom_call.1} parent=1 // pred_check
      _
    $region19: #{tpu_custom_call.1} parent=1 // pred_check_branch
      %51 = sbr.rel (0) target = $region21
    $region20: #{tpu_custom_call.1} parent=1 // pred_region
      %53 = dma.done [#allocation6], 1024
    $region21: #{tpu_custom_call.1} parent=1 // pred_fallthru
      _
    // Predicated region
    $region22: #{tpu_custom_call.1} parent=1 // pred_check
      _
    $region23: #{tpu_custom_call.1} parent=1 // pred_check_branch
      %55 = sbr.rel (0) target = $region25
    $region24: #{tpu_custom_call.1} parent=1 // pred_region
      %57 = dma.done [#allocation6], 32
    $region25: #{tpu_custom_call.1} parent=1 // pred_fallthru
      _
    %v58 = vld [vmem:[#allocation2] sm:$0xff]
    %v59 = vld [vmem:[#allocation5] sm:$0xff]
    %v60 = vld [vmem:[#allocation5 + $0x8] sm:$0xff]
    %v61 = vld [vmem:[#allocation5 + $0x10] sm:$0xff]
    %v62 = vld [vmem:[#allocation5 + $0x18] sm:$0xff]
    %v63 = vld [vmem:[#allocation5 + $0x20] sm:$0xff]
    %v64 = vld [vmem:[#allocation5 + $0x28] sm:$0xff]
    %v65 = vld [vmem:[#allocation5 + $0x30] sm:$0xff]
    %v66 = vld [vmem:[#allocation5 + $0x38] sm:$0xff]
    %v67 = vld [vmem:[#allocation7] sm:$0x3]
    %v69 = vperm.slane %v67, 0
    %v70 = vperm.slane %v67, 1
    %vm73 = vcmask 261120
    %v75 = vsel %vm73, %v58, 0
    %77 = vmatpush.msra.mxu0 0.0
    %78 = vmatpush.msra.mxu0 0.0
    %79 = vmatpush.msra.mxu0 0.0
    %80 = vmatpush.msra.mxu0 0.0
    %81 = vmatpush.msra.mxu0 0.0
    %82 = vmatpush.msra.mxu0 0.0
    %83 = vmatpush.msra.mxu0 0.0
    %84 = vmatpush.msra.mxu0 0.0
    %85 = vmatpush.msra.mxu0 0.0
    %86 = vmatpush.msra.mxu0 0.0
    %87 = vmatpush.msra.mxu0 0.0
    %88 = vmatpush.msra.mxu0 0.0
    %89 = vmatpush.msra.mxu0 %v65
    %90 = vmatpush.msra.mxu0 %v63
    %91 = vmatpush.msra.mxu0 %v61
    %92 = vmatpush.msra.mxu0 %v59
    %93 = vmatmul.f32.gmra.mxu0 %v75
    %v94 = vpop.f32.mrf.mxu0
    %v95 = vadd.f32 %v69, %v94
    %96 = vdwg.mxu0
    %97 = vmatpush.msra.mxu0 0.0
    %98 = vmatpush.msra.mxu0 0.0
    %99 = vmatpush.msra.mxu0 0.0
    %100 = vmatpush.msra.mxu0 0.0
    %101 = vmatpush.msra.mxu0 0.0
    %102 = vmatpush.msra.mxu0 0.0
    %103 = vmatpush.msra.mxu0 0.0
    %104 = vmatpush.msra.mxu0 0.0
    %105 = vmatpush.msra.mxu0 0.0
    %106 = vmatpush.msra.mxu0 0.0
    %107 = vmatpush.msra.mxu0 0.0
    %108 = vmatpush.msra.mxu0 0.0
    %109 = vmatpush.msra.mxu0 %v66
    %110 = vmatpush.msra.mxu0 %v64
    %111 = vmatpush.msra.mxu0 %v62
    %112 = vmatpush.msra.mxu0 %v60
    %113 = vmatmul.f32.gmra.mxu0 %v75
    %v114 = vpop.f32.mrf.mxu0
    %v115 = vadd.f32 %v70, %v114
    %116 = vdwg.mxu0
    %117 = vst [vmem:[#allocation8] sm:$0xff] %v95
    %vm118 = vcmask 588800
    %119 = vst.msk [vmem:[#allocation8 + $0x8] sm:$0xff] %vm118, %v115
    // Predicated region
    $region26: #{tpu_custom_call.1} parent=1 // pred_check
      _
    $region27: #{tpu_custom_call.1} parent=1 // pred_check_branch
      %121 = sbr.rel (0) target = $region29
    $region28: #{tpu_custom_call.1} parent=1 // pred_region
      %123 = vsyncadd [#allocation4], 0
      %s125 = sshll.u32 [#allocation8], 4
      %s126 = int_to_ptr.vmem [resolvable:$true] %s125
      %s127 = sshll.u32 %s3, 4
      %s128 = int_to_ptr.hbm [resolvable:$true] %s127
      %130 = dma.vmem_to_hbm [thread:$0]  %s126, 256, %s128, [#allocation4]
    $region29: #{tpu_custom_call.1} parent=1 // pred_fallthru
      _
    // Predicated region
    $region30: #{tpu_custom_call.1} parent=1 // pred_check
      _
    $region31: #{tpu_custom_call.1} parent=1 // pred_check_branch
      %132 = sbr.rel (0) target = $region33
    $region32: #{tpu_custom_call.1} parent=1 // pred_region
      %134 = dma.done [#allocation4], 256
    $region33: #{tpu_custom_call.1} parent=1 // pred_fallthru
      _
    %135 = vsyncpa [#allocation3], 1
    %136 = vsyncpa [#allocation6], 1
    %137 = vsyncpa [#allocation4], 1

</llo_original>
